<compile_context>
chip_gen: v5e
topology: v5e:2x2
jax: 0.10.0
libtpu: 0.0.40
codegen_flags: <defaults>
</compile_context>

<pallas_src>
import functools

import jax
import jax.numpy as jnp
from jax.experimental import pallas as pl
from jax.experimental.pallas import tpu as pltpu


def _infonce_kernel(u_ref, it_ref, lab_ref, o_ref,
                    m_sc, l_sc, s_sc, *,
                    inv_temp: float, batch: int, tile_m: int, tile_k: int):
    """One (row-tile, column-tile) step of the InfoNCE loss.

    u_ref  : (TM, D)    user-embedding row tile (native dtype)
    it_ref : (TK, D)    item-embedding column tile (native dtype, NOT transposed)
    lab_ref: (1, TK)    labels column tile (f32)
    o_ref  : (1,1,128)  per-row-tile partials: lane0 = sum_i lse_i,
                        lane1 = sum_{i,j} lab_j * sim_ij
    m_sc   : (TM, 1)    running row max       (f32 VMEM scratch)
    l_sc   : (TM, 1)    running row exp-sum   (f32 VMEM scratch)
    s_sc   : (TM, 1)    running row lab.sim   (f32 VMEM scratch)
    """
    i = pl.program_id(0)
    k = pl.program_id(1)
    nk = pl.num_programs(1)

    @pl.when(k == 0)
    def _():
        m_sc[...] = jnp.full_like(m_sc, -jnp.inf)
        l_sc[...] = jnp.zeros_like(l_sc)
        s_sc[...] = jnp.zeros_like(s_sc)

    # (TM, TK) similarity tile on the MXU, contracting the minor dim of both
    # operands ('md,nd->mn') -- no transpose anywhere, f32 accumulation;
    # 1/temperature applied in f32 (exactly the reference's division).
    sim = jax.lax.dot_general(
        u_ref[...], it_ref[...],
        dimension_numbers=(((1,), (1,)), ((), ())),
        preferred_element_type=jnp.float32) * inv_temp          # (TM, TK) f32

    # Column validity mask (ragged last item tile / padded garbage columns).
    col = k * tile_k + jax.lax.broadcasted_iota(jnp.int32, (1, tile_k), 1)
    col_valid = col < batch                                       # (1, TK)

    # ---- online (flash-style) log-sum-exp across the column tiles ----
    sim_lse = jnp.where(col_valid, sim, -jnp.inf)
    m_new = jnp.maximum(m_sc[...], jnp.max(sim_lse, axis=1, keepdims=True))
    alpha = jnp.exp(m_sc[...] - m_new)
    p = jnp.exp(sim_lse - m_new)                 # invalid columns -> exp(-inf)=0
    l_sc[...] = alpha * l_sc[...] + jnp.sum(p, axis=1, keepdims=True)
    m_sc[...] = m_new

    # ---- label-weighted similarity term (linear -> plain accumulation) ----
    # Reuses the f32 sim tile already on hand; no second MXU matmul.
    s_sc[...] += jnp.sum(jnp.where(col_valid, sim * lab_ref[...], 0.0),
                         axis=1, keepdims=True)

    @pl.when(k == nk - 1)
    def _():
        row = i * tile_m + jax.lax.broadcasted_iota(jnp.int32, (tile_m, 1), 0)
        row_valid = row < batch                                   # (TM, 1)
        lse = m_sc[...] + jnp.log(l_sc[...])                      # (TM, 1)
        lse_sum = jnp.sum(jnp.where(row_valid, lse, 0.0))
        lab_sum = jnp.sum(jnp.where(row_valid, s_sc[...], 0.0))
        lane = jax.lax.broadcasted_iota(jnp.int32, (1, 1, 128), 2)
        o_ref[...] = (jnp.where(lane == 0, lse_sum, 0.0)
                      + jnp.where(lane == 1, lab_sum, 0.0))


def _choose_tiles(B: int, D: int, itemsize: int):
    """Largest (tile_m, tile_k) that fits a cross-generation VMEM budget."""
    def est(tm, tk):
        return (2 * tm * D * itemsize          # user tile, double-buffered
                + 2 * tk * D * itemsize        # item tile, double-buffered
                + 2 * max(tk, 128) * 4         # labels row tile
                + 3 * tm * tk * 4              # f32 sim + exp temporaries
                + 3 * tm * 128 * 4)            # (TM,1) f32 scratch, lane-padded

    budget = 20 * 1024 * 1024   # conservative across v5e/v6e/v7x scoped VMEM
    m_opts = ([B] if B <= 256 else []) + [m for m in (256, 128, 64, 32, 16, 8) if m < B]
    k_opts = ([B] if B <= 1024 else []) + [k for k in (1024, 512, 256, 128) if k < B]
    for tm in m_opts:                      # prefer the largest row tile,
        for tk in k_opts:                  # then the largest column tile
            if est(tm, tk) <= budget:
                return tm, tk
    # TODO(synk): also tile the contraction (D) axis for extreme embedding dims.
    return m_opts[-1], k_opts[-1]


def infonce_loss(user_embeddings: jax.Array,
                 item_embeddings: jax.Array,
                 labels: jax.Array,
                 temperature: float = 0.07,
                 *, tile_m: int | None = None, tile_k: int | None = None) -> jax.Array:
    B, D = user_embeddings.shape
    assert item_embeddings.shape == (B, D)
    assert labels.shape == (B,)

    labels_f32 = labels.astype(jnp.float32)
    labels_row = labels_f32.reshape(1, B)          # lane-oriented f32 row

    auto_m, auto_k = _choose_tiles(B, D, user_embeddings.dtype.itemsize)
    tile_m = auto_m if tile_m is None else tile_m
    tile_k = auto_k if tile_k is None else tile_k
    grid_m = pl.cdiv(B, tile_m)
    grid_k = pl.cdiv(B, tile_k)

    kernel = functools.partial(
        _infonce_kernel,
        inv_temp=float(1.0 / temperature),
        batch=B, tile_m=tile_m, tile_k=tile_k)

    partials = pl.pallas_call(
        kernel,
        out_shape=jax.ShapeDtypeStruct((grid_m, 1, 128), jnp.float32),
        grid=(grid_m, grid_k),
        in_specs=[
            pl.BlockSpec((tile_m, D), lambda i, k: (i, 0)),   # user rows
            pl.BlockSpec((tile_k, D), lambda i, k: (k, 0)),   # item rows (streamed)
            pl.BlockSpec((1, tile_k), lambda i, k: (0, k)),   # labels (streamed)
        ],
        out_specs=pl.BlockSpec((1, 1, 128), lambda i, k: (i, 0, 0)),
        scratch_shapes=[pltpu.VMEM((tile_m, 1), jnp.float32)] * 3,
        compiler_params=pltpu.CompilerParams(
            # Row tiles are independent (each owns its partial-output block) ->
            # "parallel" lets v7x's two TensorCores split them; the column axis
            # carries the online-LSE state -> "arbitrary" reduction axis, last.
            dimension_semantics=("parallel", "arbitrary"),
            vmem_limit_bytes=32 * 1024 * 1024,
        ),
    )(user_embeddings, item_embeddings, labels_row)

    lse_total = jnp.sum(partials[:, 0, 0])
    lab_sim_total = jnp.sum(partials[:, 0, 1])
    # loss = sum_i lse_i - (sum_{i,j} lab_j * sim_ij) / sum(lab)
    # (division by sum(labels) is unguarded, matching the PyTorch module)
    return lse_total - lab_sim_total / jnp.sum(labels_f32)


def _reference(user, item, labels, temperature=0.07):
    # Same math as the PyTorch module, in the numerically stable log-softmax
    # form so the reference itself stays finite at T=0.07.
    sim = (user.astype(jnp.float32) @ item.astype(jnp.float32).T) / temperature
    log_prob = jax.nn.log_softmax(sim, axis=1)
    lab = labels.astype(jnp.float32)
    return -jnp.sum(lab[None, :] * log_prob) / jnp.sum(lab)


if __name__ == "__main__":
    key = jax.random.PRNGKey(0)
    k_u, k_i, k_l = jax.random.split(key, 3)

    # Small single-tile case.
    B, D = 8, 32
    user = jax.random.normal(k_u, (B, D), dtype=jnp.float32)
    item = jax.random.normal(k_i, (B, D), dtype=jnp.float32)
    labels = jax.random.bernoulli(k_l, 0.5, (B,)).astype(jnp.float32)
    labels = labels.at[0].set(1.0)            # ensure labels.sum() > 0

    loss = infonce_loss(user, item, labels, temperature=0.07)
    jax.block_until_ready(loss)
    ref = _reference(user, item, labels, temperature=0.07)
    assert jnp.isfinite(loss), loss
    assert jnp.allclose(loss, ref, rtol=1e-3, atol=1e-3), (loss, ref)

    # Multi-tile case: exercises ragged row/column tiles, the online LSE across
    # column tiles and the per-row-tile partial combine in JAX.
    B2, D2 = 160, 32
    k_u2, k_i2, k_l2 = jax.random.split(jax.random.PRNGKey(1), 3)
    user2 = jax.random.normal(k_u2, (B2, D2), dtype=jnp.float32)
    item2 = jax.random.normal(k_i2, (B2, D2), dtype=jnp.float32)
    labels2 = jax.random.bernoulli(k_l2, 0.3, (B2,)).astype(jnp.float32)
    labels2 = labels2.at[0].set(1.0)
    loss2 = infonce_loss(user2, item2, labels2, temperature=0.07,
                         tile_m=64, tile_k=128)
    jax.block_until_ready(loss2)
    ref2 = _reference(user2, item2, labels2, temperature=0.07)
    assert jnp.isfinite(loss2), loss2
    assert jnp.allclose(loss2, ref2, rtol=1e-3, atol=1e-3), (loss2, ref2)

    print("KERNEL_OK")
</pallas_src>

<mosaic_0001>
module attributes {stable_mosaic.version = 11 : i64} {
  func.func @_infonce_kernel(%arg0: i32, %arg1: i32, %arg2: memref<8x32xf32, #tpu.memory_space<vmem>>, %arg3: memref<8x32xf32, #tpu.memory_space<vmem>>, %arg4: memref<1x8xf32, #tpu.memory_space<vmem>>, %arg5: memref<1x1x128xf32, #tpu.memory_space<vmem>>, %arg6: memref<8x1xf32, #tpu.memory_space<vmem>>, %arg7: memref<8x1xf32, #tpu.memory_space<vmem>>, %arg8: memref<8x1xf32, #tpu.memory_space<vmem>>) attributes {dimension_semantics = [#tpu.dimension_semantics<parallel>, #tpu.dimension_semantics<arbitrary>], iteration_bounds = array<i64: 1, 1>, scalar_prefetch = 0 : i64, scratch_operands = 3 : i64, tpu.core_type = #tpu.core_type<tc>, window_params = [{transform_indices = @transform_0, window_bounds = array<i64: 8, 32>}, {transform_indices = @transform_1, window_bounds = array<i64: 8, 32>}, {transform_indices = @transform_2, window_bounds = array<i64: 1, 8>}, {transform_indices = @transform_3, window_bounds = array<i64: 1, 1, 128>}]} {
    %c0_i32 = arith.constant 0 : i32
    %0 = arith.cmpi eq, %arg1, %c0_i32 : i32
    %1 = arith.extui %0 : i1 to i32
    %c0_i32_0 = arith.constant 0 : i32
    %2 = arith.cmpi ne, %1, %c0_i32_0 : i32
    scf.if %2 {
      %cst_29 = arith.constant 0xFF800000 : f32
      %50 = vector.broadcast %cst_29 : f32 to vector<8x1xf32>
      %c0_30 = arith.constant 0 : index
      %c0_31 = arith.constant 0 : index
      %51 = vector.load %arg6[%c0_30, %c0_31] : memref<8x1xf32, #tpu.memory_space<vmem>>, vector<8x1xf32>
      tpu.vector_store %arg6[%c0_30, %c0_31], %50 {strides = array<i32>} : memref<8x1xf32, #tpu.memory_space<vmem>>, vector<8x1xf32>,
      %cst_32 = arith.constant 0.000000e+00 : f32
      %52 = vector.broadcast %cst_32 : f32 to vector<8x1xf32>
      %c0_33 = arith.constant 0 : index
      %c0_34 = arith.constant 0 : index
      %53 = vector.load %arg7[%c0_33, %c0_34] : memref<8x1xf32, #tpu.memory_space<vmem>>, vector<8x1xf32>
      tpu.vector_store %arg7[%c0_33, %c0_34], %52 {strides = array<i32>} : memref<8x1xf32, #tpu.memory_space<vmem>>, vector<8x1xf32>,
      %cst_35 = arith.constant 0.000000e+00 : f32
      %54 = vector.broadcast %cst_35 : f32 to vector<8x1xf32>
      %c0_36 = arith.constant 0 : index
      %c0_37 = arith.constant 0 : index
      %55 = vector.load %arg8[%c0_36, %c0_37] : memref<8x1xf32, #tpu.memory_space<vmem>>, vector<8x1xf32>
      tpu.vector_store %arg8[%c0_36, %c0_37], %54 {strides = array<i32>} : memref<8x1xf32, #tpu.memory_space<vmem>>, vector<8x1xf32>,
    } else {
    }
    %c0 = arith.constant 0 : index
    %c0_1 = arith.constant 0 : index
    %3 = vector.load %arg2[%c0, %c0_1] : memref<8x32xf32, #tpu.memory_space<vmem>>, vector<8x32xf32>
    %c0_2 = arith.constant 0 : index
    %c0_3 = arith.constant 0 : index
    %4 = vector.load %arg3[%c0_2, %c0_3] : memref<8x32xf32, #tpu.memory_space<vmem>>, vector<8x32xf32>
    %cst = arith.constant dense<0.000000e+00> : vector<8x8xf32>
    %5 = tpu.matmul %3, %4, %cst {dimension_numbers = #tpu.dot_dimension_numbers<[1], [1], [0], [0], [0, 0, 1, 0], [], []>} : vector<8x32xf32>, vector<8x32xf32>, vector<8x8xf32> -> vector<8x8xf32>
    %cst_4 = arith.constant 14.2857141 : f32
    %6 = vector.broadcast %cst_4 : f32 to vector<8x8xf32>
    %7 = arith.mulf %5, %6 : vector<8x8xf32>
    %c8_i32 = arith.constant 8 : i32
    %8 = arith.muli %arg1, %c8_i32 : i32
    %9 = tpu.iota {dimensions = array<i32: 1>} : vector<1x8xi32>
    %10 = vector.broadcast %8 : i32 to vector<1x8xi32>
    %11 = arith.addi %10, %9 : vector<1x8xi32>
    %c8_i32_5 = arith.constant 8 : i32
    %12 = vector.broadcast %c8_i32_5 : i32 to vector<1x8xi32>
    %13 = arith.cmpi slt, %11, %12 : vector<1x8xi32>
    %cst_6 = arith.constant 0xFF800000 : f32
    %14 = vector.shape_cast %13 : vector<1x8xi1> to vector<1x8xi1>
    %15 = vector.broadcast %14 : vector<1x8xi1> to vector<8x8xi1>
    %16 = vector.broadcast %cst_6 : f32 to vector<8x8xf32>
    %17 = arith.select %15, %7, %16 : vector<8x8xi1>, vector<8x8xf32>
    %c0_7 = arith.constant 0 : index
    %c0_8 = arith.constant 0 : index
    %18 = vector.load %arg6[%c0_7, %c0_8] : memref<8x1xf32, #tpu.memory_space<vmem>>, vector<8x1xf32>
    %cst_9 = arith.constant dense<0xFF800000> : vector<8xf32>
    %19 = vector.multi_reduction <maximumf>, %17, %cst_9 [1] : vector<8x8xf32> to vector<8xf32>
    %20 = vector.shape_cast %19 : vector<8xf32> to vector<8x1xf32>
    %21 = arith.maximumf %18, %20 : vector<8x1xf32>
    %c0_10 = arith.constant 0 : index
    %c0_11 = arith.constant 0 : index
    %22 = vector.load %arg6[%c0_10, %c0_11] : memref<8x1xf32, #tpu.memory_space<vmem>>, vector<8x1xf32>
    %23 = arith.subf %22, %21 : vector<8x1xf32>
    %24 = math.exp %23 : vector<8x1xf32>
    %25 = vector.broadcast %21 : vector<8x1xf32> to vector<8x8xf32>
    %26 = arith.subf %17, %25 : vector<8x8xf32>
    %27 = math.exp %26 : vector<8x8xf32>
    %c0_12 = arith.constant 0 : index
    %c0_13 = arith.constant 0 : index
    %28 = vector.load %arg7[%c0_12, %c0_13] : memref<8x1xf32, #tpu.memory_space<vmem>>, vector<8x1xf32>
    %29 = arith.mulf %24, %28 : vector<8x1xf32>
    %cst_14 = arith.constant dense<0.000000e+00> : vector<8xf32>
    %30 = vector.multi_reduction <add>, %27, %cst_14 [1] : vector<8x8xf32> to vector<8xf32>
    %31 = vector.shape_cast %30 : vector<8xf32> to vector<8x1xf32>
    %32 = arith.addf %29, %31 : vector<8x1xf32>
    %c0_15 = arith.constant 0 : index
    %c0_16 = arith.constant 0 : index
    %33 = vector.load %arg7[%c0_15, %c0_16] : memref<8x1xf32, #tpu.memory_space<vmem>>, vector<8x1xf32>
    tpu.vector_store %arg7[%c0_15, %c0_16], %32 {strides = array<i32>} : memref<8x1xf32, #tpu.memory_space<vmem>>, vector<8x1xf32>,
    %c0_17 = arith.constant 0 : index
    %c0_18 = arith.constant 0 : index
    %34 = vector.load %arg6[%c0_17, %c0_18] : memref<8x1xf32, #tpu.memory_space<vmem>>, vector<8x1xf32>
    tpu.vector_store %arg6[%c0_17, %c0_18], %21 {strides = array<i32>} : memref<8x1xf32, #tpu.memory_space<vmem>>, vector<8x1xf32>,
    %c0_19 = arith.constant 0 : index
    %c0_20 = arith.constant 0 : index
    %35 = vector.load %arg8[%c0_19, %c0_20] : memref<8x1xf32, #tpu.memory_space<vmem>>, vector<8x1xf32>
    %c0_21 = arith.constant 0 : index
    %c0_22 = arith.constant 0 : index
    %36 = vector.load %arg4[%c0_21, %c0_22] : memref<1x8xf32, #tpu.memory_space<vmem>>, vector<1x8xf32>
    %37 = vector.broadcast %36 : vector<1x8xf32> to vector<8x8xf32>
    %38 = arith.mulf %7, %37 : vector<8x8xf32>
    %cst_23 = arith.constant 0.000000e+00 : f32
    %39 = vector.shape_cast %13 : vector<1x8xi1> to vector<1x8xi1>
    %40 = vector.broadcast %39 : vector<1x8xi1> to vector<8x8xi1>
    %41 = vector.broadcast %cst_23 : f32 to vector<8x8xf32>
    %42 = arith.select %40, %38, %41 : vector<8x8xi1>, vector<8x8xf32>
    %cst_24 = arith.constant dense<0.000000e+00> : vector<8xf32>
    %43 = vector.multi_reduction <add>, %42, %cst_24 [1] : vector<8x8xf32> to vector<8xf32>
    %44 = vector.shape_cast %43 : vector<8xf32> to vector<8x1xf32>
    %45 = arith.addf %35, %44 : vector<8x1xf32>
    %c0_25 = arith.constant 0 : index
    %c0_26 = arith.constant 0 : index
    %46 = vector.load %arg8[%c0_25, %c0_26] : memref<8x1xf32, #tpu.memory_space<vmem>>, vector<8x1xf32>
    tpu.vector_store %arg8[%c0_25, %c0_26], %45 {strides = array<i32>} : memref<8x1xf32, #tpu.memory_space<vmem>>, vector<8x1xf32>,
    %c0_i32_27 = arith.constant 0 : i32
    %47 = arith.cmpi eq, %arg1, %c0_i32_27 : i32
    %48 = arith.extui %47 : i1 to i32
    %c0_i32_28 = arith.constant 0 : i32
    %49 = arith.cmpi ne, %48, %c0_i32_28 : i32
    scf.if %49 {
      %c8_i32_29 = arith.constant 8 : i32
      %50 = arith.muli %arg0, %c8_i32_29 : i32
      %51 = tpu.iota {dimensions = array<i32: 0>} : vector<8x1xi32>
      %52 = vector.broadcast %50 : i32 to vector<8x1xi32>
      %53 = arith.addi %52, %51 : vector<8x1xi32>
      %c8_i32_30 = arith.constant 8 : i32
      %54 = vector.broadcast %c8_i32_30 : i32 to vector<8x1xi32>
      %55 = arith.cmpi slt, %53, %54 : vector<8x1xi32>
      %c0_31 = arith.constant 0 : index
      %c0_32 = arith.constant 0 : index
      %56 = vector.load %arg6[%c0_31, %c0_32] : memref<8x1xf32, #tpu.memory_space<vmem>>, vector<8x1xf32>
      %c0_33 = arith.constant 0 : index
      %c0_34 = arith.constant 0 : index
      %57 = vector.load %arg7[%c0_33, %c0_34] : memref<8x1xf32, #tpu.memory_space<vmem>>, vector<8x1xf32>
      %58 = math.log %57 : vector<8x1xf32>
      %59 = arith.addf %56, %58 : vector<8x1xf32>
      %cst_35 = arith.constant 0.000000e+00 : f32
      %60 = vector.broadcast %cst_35 : f32 to vector<8x1xf32>
      %61 = arith.select %55, %59, %60 : vector<8x1xi1>, vector<8x1xf32>
      %62 = vector.shape_cast %61 : vector<8x1xf32> to vector<1x8x1xf32>
      %cst_36 = arith.constant dense<0.000000e+00> : vector<1xf32>
      %63 = vector.multi_reduction <add>, %62, %cst_36 [1, 2] : vector<1x8x1xf32> to vector<1xf32>
      %64 = vector.shape_cast %63 : vector<1xf32> to vector<1x1x1xf32>
      %65 = vector.extract %64[0, 0, 0] : f32 from vector<1x1x1xf32>
      %c0_37 = arith.constant 0 : index
      %c0_38 = arith.constant 0 : index
      %66 = vector.load %arg8[%c0_37, %c0_38] : memref<8x1xf32, #tpu.memory_space<vmem>>, vector<8x1xf32>
      %cst_39 = arith.constant 0.000000e+00 : f32
      %67 = vector.broadcast %cst_39 : f32 to vector<8x1xf32>
      %68 = arith.select %55, %66, %67 : vector<8x1xi1>, vector<8x1xf32>
      %69 = vector.shape_cast %68 : vector<8x1xf32> to vector<1x8x1xf32>
      %cst_40 = arith.constant dense<0.000000e+00> : vector<1xf32>
      %70 = vector.multi_reduction <add>, %69, %cst_40 [1, 2] : vector<1x8x1xf32> to vector<1xf32>
      %71 = vector.shape_cast %70 : vector<1xf32> to vector<1x1x1xf32>
      %72 = vector.extract %71[0, 0, 0] : f32 from vector<1x1x1xf32>
      %73 = tpu.iota {dimensions = array<i32: 2>} : vector<1x1x128xi32>
      %c0_i32_41 = arith.constant 0 : i32
      %74 = vector.broadcast %c0_i32_41 : i32 to vector<1x1x128xi32>
      %75 = arith.cmpi eq, %73, %74 : vector<1x1x128xi32>
      %cst_42 = arith.constant 0.000000e+00 : f32
      %76 = vector.broadcast %65 : f32 to vector<1x1x128xf32>
      %77 = vector.broadcast %cst_42 : f32 to vector<1x1x128xf32>
      %78 = arith.select %75, %76, %77 : vector<1x1x128xi1>, vector<1x1x128xf32>
      %c1_i32 = arith.constant 1 : i32
      %79 = vector.broadcast %c1_i32 : i32 to vector<1x1x128xi32>
      %80 = arith.cmpi eq, %73, %79 : vector<1x1x128xi32>
      %cst_43 = arith.constant 0.000000e+00 : f32
      %81 = vector.broadcast %72 : f32 to vector<1x1x128xf32>
      %82 = vector.broadcast %cst_43 : f32 to vector<1x1x128xf32>
      %83 = arith.select %80, %81, %82 : vector<1x1x128xi1>, vector<1x1x128xf32>
      %84 = arith.addf %78, %83 : vector<1x1x128xf32>
      %c0_44 = arith.constant 0 : index
      %c0_45 = arith.constant 0 : index
      %c0_46 = arith.constant 0 : index
      %85 = vector.load %arg5[%c0_44, %c0_45, %c0_46] : memref<1x1x128xf32, #tpu.memory_space<vmem>>, vector<1x1x128xf32>
      tpu.vector_store %arg5[%c0_44, %c0_45, %c0_46], %84 {strides = array<i32>} : memref<1x1x128xf32, #tpu.memory_space<vmem>>, vector<1x1x128xf32>,
    } else {
    }
    return
  }
  func.func @transform_0(%arg0: i32, %arg1: i32) -> (i32, i32) {
    %c0_i32 = arith.constant 0 : i32
    %c0_i32_0 = arith.constant 0 : i32
    return %arg0, %c0_i32 : i32, i32
  }
  func.func @transform_1(%arg0: i32, %arg1: i32) -> (i32, i32) {
    %c0_i32 = arith.constant 0 : i32
    %c0_i32_0 = arith.constant 0 : i32
    return %arg1, %c0_i32 : i32, i32
  }
  func.func @transform_2(%arg0: i32, %arg1: i32) -> (i32, i32) {
    %c0_i32 = arith.constant 0 : i32
    %c0_i32_0 = arith.constant 0 : i32
    return %c0_i32, %arg1 : i32, i32
  }
  func.func @transform_3(%arg0: i32, %arg1: i32) -> (i32, i32, i32) {
    %c0_i32 = arith.constant 0 : i32
    %c0_i32_0 = arith.constant 0 : i32
    %c0_i32_1 = arith.constant 0 : i32
    return %arg0, %c0_i32, %c0_i32_0 : i32, i32, i32
  }
}

</mosaic_0001>

<llo_original>
// kernel: tpu_custom_call.1
$region0: #{tpu_custom_call.1}
  #allocation0 [shape = 'u32[]', space=smem, size = 0x4, offset = 0x4, fixed_abs, tag = 'smem constant byte address 0x4 - core index']
  #allocation1 [shape = 'u32[72,128]{1,0:T(1,128)}', space=vmem, size = 0x9000, scoped, tag = 'internal scratch']
  #allocation2 [shape = 'f32[8,1]{1,0:T(8,128)}', space=vmem, size = 0x1000, scoped, tag = 'scratch operand']
  #allocation3 [shape = 'f32[8,1]{1,0:T(8,128)}', space=vmem, size = 0x1000, scoped, tag = 'scratch operand']
  #allocation4 [shape = 'f32[8,1]{1,0:T(8,128)}', space=vmem, size = 0x1000, scoped, tag = 'scratch operand']
  %s0 = inlined_call_operand.hbm [shape: f32[8,32], index: 0, kind: input, shape index: {}]
  %s1 = inlined_call_operand.hbm [shape: f32[8,32], index: 1, kind: input, shape index: {}]
  %s2 = inlined_call_operand.vmem [shape: f32[1,8], index: 2, kind: input, shape index: {}]
  %s3 = inlined_call_operand.hbm [shape: f32[1,1,128], index: 3, kind: output, shape index: {}]
  %s4 = sld [smem:[#allocation0]]
  $region38: #{tpu_custom_call.1} parent=0
    _
  %s6 = ssub.s32 1, %s4
  %s7 = scalar_select 0, %s6, %s4
  $region1: #{tpu_custom_call.1} parent=0
    #allocation5 [shape = 'u8[4096]{0}', space=vmem, size = 0x1000, scoped, tag = 'input window, operand 0, single buffered']
    #allocation6 [shape = 's32[1]{0}', space=sflag, size = 0x4, scoped, tag = 'scoped memory for tpu_custom_call.1']
    #allocation7 [shape = 's32[1]{0}', space=sflag, size = 0x4, scoped, tag = 'scoped memory for tpu_custom_call.1']
    #allocation8 [shape = 'u8[4096]{0}', space=vmem, size = 0x1000, scoped, tag = 'input window, operand 1, single buffered']
    #allocation9 [shape = 's32[1]{0}', space=sflag, size = 0x4, scoped, tag = 'scoped memory for tpu_custom_call.1']
    #allocation10 [shape = 'u8[512]{0}', space=vmem, size = 0x400, scoped, tag = 'output window, operand 0, single buffered']
    %8 = vsyncpa [#allocation6], 0
    %9 = vsyncpa [#allocation9], 0
    %10 = vsyncpa [#allocation7], 0
    // Predicated region
    $region2: #{tpu_custom_call.1} parent=1 // pred_check
      _
    $region3: #{tpu_custom_call.1} parent=1 // pred_check_branch
      %12 = sbr.rel (0) target = $region5
    $region4: #{tpu_custom_call.1} parent=1 // pred_region
      %14 = vsyncadd [#allocation6], 0
      %s16 = sshll.u32 %s0, 4
      %s17 = int_to_ptr.hbm [resolvable:$true] %s16
      %s18 = sshll.u32 [#allocation5], 4
      %s19 = int_to_ptr.vmem [resolvable:$true] %s18
      %21 = dma.hbm_to_vmem [thread:$0]  %s17, 128, %s19, [#allocation6]
    $region5: #{tpu_custom_call.1} parent=1 // pred_fallthru
      _
    // Predicated region
    $region6: #{tpu_custom_call.1} parent=1 // pred_check
      _
    $region7: #{tpu_custom_call.1} parent=1 // pred_check_branch
      %23 = sbr.rel (0) target = $region9
    $region8: #{tpu_custom_call.1} parent=1 // pred_region
      %25 = vsyncadd [#allocation9], 0
      %s27 = sshll.u32 %s1, 4
      %s28 = int_to_ptr.hbm [resolvable:$true] %s27
      %s29 = sshll.u32 [#allocation8], 4
      %s30 = int_to_ptr.vmem [resolvable:$true] %s29
      %32 = dma.hbm_to_vmem [thread:$0]  %s28, 128, %s30, [#allocation9]
    $region9: #{tpu_custom_call.1} parent=1 // pred_fallthru
      _
    // Predicated region
    $region10: #{tpu_custom_call.1} parent=1 // pred_check
      _
    $region11: #{tpu_custom_call.1} parent=1 // pred_check_branch
      %34 = sbr.rel (0) target = $region13
    $region12: #{tpu_custom_call.1} parent=1 // pred_region
      _
    $region13: #{tpu_custom_call.1} parent=1 // pred_fallthru
      _
    // Predicated region
    $region14: #{tpu_custom_call.1} parent=1 // pred_check
      _
    $region15: #{tpu_custom_call.1} parent=1 // pred_check_branch
      %36 = sbr.rel (0) target = $region17
    $region16: #{tpu_custom_call.1} parent=1 // pred_region
      %38 = dma.done [#allocation6], 128
    $region17: #{tpu_custom_call.1} parent=1 // pred_fallthru
      _
    // Predicated region
    $region18: #{tpu_custom_call.1} parent=1 // pred_check
      _
    $region19: #{tpu_custom_call.1} parent=1 // pred_check_branch
      %40 = sbr.rel (0) target = $region21
    $region20: #{tpu_custom_call.1} parent=1 // pred_region
      %42 = dma.done [#allocation9], 128
    $region21: #{tpu_custom_call.1} parent=1 // pred_fallthru
      _
    %p43 = scmp.eq.s32.totalorder 0, 0
    // Predicated region
    $region22: #{tpu_custom_call.1} parent=1 // pred_check
      %p44 = pneg %p43
    $region23: #{tpu_custom_call.1} parent=1 // pred_check_branch
      %46 = sbr.rel (%p44) target = $region25
    $region24: #{tpu_custom_call.1} parent=1 // pred_region
      %vm47 = vcmask 7168
      %48 = vst.msk [vmem:[#allocation2] sm:$0xff] %vm47, -inf
      %49 = vst.msk [vmem:[#allocation3] sm:$0xff] %vm47, 0.0
      %50 = vst.msk [vmem:[#allocation4] sm:$0xff] %vm47, 0.0
    $region25: #{tpu_custom_call.1} parent=1 // pred_fallthru
      _
    %v51 = vld [vmem:[#allocation5] sm:$0xff]
    %v52 = vld [vmem:[#allocation8] sm:$0xff]
    %vm53 = vcmask 261120
    %v55 = vsel %vm53, %v51, 0
    %v58 = vsel %vm53, %v52, 0
    %60 = vmatpush.xpose.msra.mxu0 0.0
    %61 = vmatpush.xpose.msra.mxu0 0.0
    %62 = vmatpush.xpose.msra.mxu0 0.0
    %63 = vmatpush.xpose.msra.mxu0 0.0
    %64 = vmatpush.xpose.msra.mxu0 0.0
    %65 = vmatpush.xpose.msra.mxu0 0.0
    %66 = vmatpush.xpose.msra.mxu0 0.0
    %67 = vmatpush.xpose.msra.mxu0 0.0
    %68 = vmatpush.xpose.msra.mxu0 0.0
    %69 = vmatpush.xpose.msra.mxu0 0.0
    %70 = vmatpush.xpose.msra.mxu0 0.0
    %71 = vmatpush.xpose.msra.mxu0 0.0
    %72 = vmatpush.xpose.msra.mxu0 0.0
    %73 = vmatpush.xpose.msra.mxu0 0.0
    %74 = vmatpush.xpose.msra.mxu0 0.0
    %75 = vmatpush.xpose.msra.mxu0 %v58
    %76 = vmatmul.f32.gmra.mxu0 %v55
    %v77 = vpop.f32.mrf.mxu0
    %v78 = vadd.f32 0.0, %v77
    %79 = vdwg.mxu0
    %v80 = vmul.f32 %v78, 14.285714
    %s81 = smul.u32 0, 8
    %v82 = vlaneseq
    %v83 = vand.u32 %v82, 127
    %v84 = vstv %s81
    %v85 = vadd.s32 %v84, %v83
    %vm86 = vcmp.lt.s32.totalorder %v85, 8
    %v87 = vsel %vm86, 1, 0
    %vm88 = vcmp.eq.s32.totalorder %v87, 1
    %v89 = vsel %vm88, %v80, -inf
    %v90 = vld [vmem:[#allocation2] sm:$0xff]
    %vm91 = vcmask 64512
    %v92 = vsel %vm91, %v89, -inf
    %93 = vmax.xlane.f32.xlu0 %v92
    %v94 = vpop.xlane.xlu0 %93
    %v95 = vmax.f32 %v90, %v94
    %v96 = vsub.f32 %v90, %v95
    %v97 = vmul.f32 %v96, 1.442695
    %v98 = vpow.pop %v97
    %100 = vset.pattern.permute.xlu0 0
    %101 = vperm.xlu0 %100, %v95
    %v102 = vpop.permute.xlu0 %101
    %v104 = vsub.f32 %v89, %v102
    %v105 = vmul.f32 %v104, 1.442695
    %v106 = vpow.pop %v105
    %v107 = vld [vmem:[#allocation3] sm:$0xff]
    %v108 = vmul.f32 %v98, %v107
    %v109 = vsel %vm91, %v106, 0.0
    %110 = vadd.xlane.f32.xlu0 %v109
    %v111 = vpop.xlane.xlu0 %110
    %v112 = vadd.f32 %v108, %v111
    %vm113 = vcmask 7168
    %114 = vst.msk [vmem:[#allocation3] sm:$0xff] %vm113, %v112
    %115 = vst.msk [vmem:[#allocation2] sm:$0xff] %vm113, %v95
    %v116 = vld [vmem:[#allocation4] sm:$0xff]
    %v117 = vld [vmem:[%s2] sm:$0x1]
    %v119 = vperm.slane %v117, 0
    %v121 = vmul.f32 %v80, %v119
    %v122 = vsel %vm88, %v121, 0.0
    %v123 = vsel %vm91, %v122, 0.0
    %124 = vadd.xlane.f32.xlu0 %v123
    %v125 = vpop.xlane.xlu0 %124
    %v126 = vadd.f32 %v116, %v125
    %127 = vst.msk [vmem:[#allocation4] sm:$0xff] %vm113, %v126
    // Predicated region
    $region26: #{tpu_custom_call.1} parent=1 // pred_check
      %p128 = pneg %p43
    $region27: #{tpu_custom_call.1} parent=1 // pred_check_branch
      %130 = sbr.rel (%p128) target = $region29
    $region28: #{tpu_custom_call.1} parent=1 // pred_region
      %s131 = smul.u32 0, 8
      %v132 = vlaneseq
      %v133 = vshrl.u32 %v132, 7
      %v134 = vstv %s131
      %v135 = vadd.s32 %v134, %v133
      %vm136 = vcmp.lt.s32.totalorder %v135, 8
      %v137 = vld [vmem:[#allocation2] sm:$0xff]
      %v138 = vld [vmem:[#allocation3] sm:$0xff]
      %v139 = vlog2.pop %v138
      %v140 = vmul.f32 %v139, 0.6931472
      %v141 = vadd.f32 %v137, %v140
      %v142 = vsel %vm136, %v141, 0.0
      %v143 = vsel %vm113, %v142, 0.0
      %144 = vadd.xlane.f32.xlu0 %v143
      %v145 = vpop.xlane.xlu0 %144
      %v146 = vrot.slane %v145, 4
      %v147 = vadd.f32 %v145, %v146
      %v148 = vrot.slane %v147, 2
      %v149 = vadd.f32 %v147, %v148
      %v150 = vrot.slane %v149, 1
      %v151 = vadd.f32 %v149, %v150
      %s152 = vtos %v151
      %v153 = vld [vmem:[#allocation4] sm:$0xff]
      %v154 = vsel %vm136, %v153, 0.0
      %v155 = vsel %vm113, %v154, 0.0
      %156 = vadd.xlane.f32.xlu0 %v155
      %v157 = vpop.xlane.xlu0 %156
      %v158 = vrot.slane %v157, 4
      %v159 = vadd.f32 %v157, %v158
      %v160 = vrot.slane %v159, 2
      %v161 = vadd.f32 %v159, %v160
      %v162 = vrot.slane %v161, 1
      %v163 = vadd.f32 %v161, %v162
      %s164 = vtos %v163
      %vm165 = vcmp.eq.s32.totalorder %v83, 0
      %v166 = vstv %s152
      %v167 = vsel %vm165, %v166, 0.0
      %vm168 = vcmp.eq.s32.totalorder %v83, 1
      %v169 = vstv %s164
      %v170 = vsel %vm168, %v169, 0.0
      %v171 = vadd.f32 %v167, %v170
      %172 = vst [vmem:[#allocation10] sm:$0x1] %v171
    $region29: #{tpu_custom_call.1} parent=1 // pred_fallthru
      _
    // Predicated region
    $region30: #{tpu_custom_call.1} parent=1 // pred_check
      _
    $region31: #{tpu_custom_call.1} parent=1 // pred_check_branch
      %174 = sbr.rel (0) target = $region33
    $region32: #{tpu_custom_call.1} parent=1 // pred_region
      %176 = vsyncadd [#allocation7], 0
      %s178 = sshll.u32 [#allocation10], 4
      %s179 = int_to_ptr.vmem [resolvable:$true] %s178
      %s180 = sshll.u32 %s3, 4
      %s181 = int_to_ptr.hbm [resolvable:$true] %s180
      %183 = dma.vmem_to_hbm [thread:$0]  %s179, 16, %s181, [#allocation7]
    $region33: #{tpu_custom_call.1} parent=1 // pred_fallthru
      _
    // Predicated region
    $region34: #{tpu_custom_call.1} parent=1 // pred_check
      _
    $region35: #{tpu_custom_call.1} parent=1 // pred_check_branch
      %185 = sbr.rel (0) target = $region37
    $region36: #{tpu_custom_call.1} parent=1 // pred_region
      %187 = dma.done [#allocation7], 16
    $region37: #{tpu_custom_call.1} parent=1 // pred_fallthru
      _
    %188 = vsyncpa [#allocation6], 1
    %189 = vsyncpa [#allocation9], 1
    %190 = vsyncpa [#allocation7], 1

</llo_original>
